<compile_context>
chip_gen: v7x
topology: tpu7x:2x2x1
jax: 0.10.0
libtpu: 0.0.40
codegen_flags: <defaults>
</compile_context>

<pallas_src>
import functools

import jax
import jax.numpy as jnp
from jax.experimental import pallas as pl
from jax.experimental.pallas import tpu as pltpu

_EPS = 1e-5  # torch BatchNorm2d default eps


# ============================ Kernel A: adder convolution ============================
def _adder_conv_kernel(xT_ref, w_ref, out_ref, *, n_k8):
    """out[c, m] = -sum_k |x[k, m] - w[c, k]|; K walked in aligned chunks of 8 sublanes."""

    def body(k8, acc):
        base = pl.multiple_of(k8 * 8, 8)
        xc = xT_ref[pl.ds(base, 8), :]          # [8, M_tile]  aligned dynamic sublane slice
        wc = w_ref[k8]                          # [C_out, 8]   dynamic leading-dim index
        for j in range(8):                      # static 8-wide unroll for VALU ILP
            acc = acc + jnp.abs(xc[j:j + 1, :] - wc[:, j:j + 1])   # [C_out, M_tile]
        return acc

    acc = jax.lax.fori_loop(0, n_k8, body, jnp.zeros(out_ref.shape, jnp.float32))
    out_ref[...] = -acc


def _im2col_kT(act, ksize, stride, padding):
    """im2col in [K, M] layout; K ordered (tap, ci), M ordered (n, ho, wo)."""
    N, C, H, W = act.shape
    Ho = (H + 2 * padding - ksize) // stride + 1
    Wo = (W + 2 * padding - ksize) // stride + 1
    ap = jnp.pad(act, ((0, 0), (0, 0), (padding, padding), (padding, padding)))
    cols = []
    for kh in range(ksize):
        for kw in range(ksize):
            cols.append(ap[:, :, kh:kh + (Ho - 1) * stride + 1:stride,
                              kw:kw + (Wo - 1) * stride + 1:stride])      # [N, C, Ho, Wo]
    pat = jnp.stack(cols, axis=0).transpose(0, 2, 1, 3, 4)                # [T, C, N, Ho, Wo]
    return pat.reshape(ksize * ksize * C, N * Ho * Wo), Ho, Wo


def adder_conv_pallas(act, w, stride, padding, m_tile_max=512):
    """AdderNet conv.  act: [N,Cin,H,W], w: [Cout,Cin,k,k].  Returns ([Cout, N*Ho*Wo], Ho, Wo)."""
    ksize = w.shape[2]
    cout = w.shape[0]
    xT, Ho, Wo = _im2col_kT(act, ksize, stride, padding)
    K, M = xT.shape

    # pad K to a multiple of 8 (zero patch vs zero weight contributes |0-0| = 0)
    K8 = ((K + 7) // 8) * 8
    wf = w.transpose(2, 3, 1, 0).reshape(K, cout).T                       # [Cout, K] (same K order)
    if K8 != K:
        xT = jnp.pad(xT, ((0, K8 - K), (0, 0)))
        wf = jnp.pad(wf, ((0, 0), (0, K8 - K)))
    n_k8 = K8 // 8
    w_ch = wf.reshape(cout, n_k8, 8).transpose(1, 0, 2)                   # [n_k8, Cout, 8]

    # pad M (lane axis) to a multiple of the tile; extra columns sliced off below
    m_tile = min(m_tile_max, ((M + 127) // 128) * 128)
    Mp = ((M + m_tile - 1) // m_tile) * m_tile
    if Mp != M:
        xT = jnp.pad(xT, ((0, 0), (0, Mp - M)))

    out = pl.pallas_call(
        functools.partial(_adder_conv_kernel, n_k8=n_k8),
        out_shape=jax.ShapeDtypeStruct((cout, Mp), jnp.float32),
        grid=(Mp // m_tile,),
        in_specs=[
            pl.BlockSpec((K8, m_tile), lambda i: (0, i)),          # patch tile  [K, M_tile]
            pl.BlockSpec((n_k8, cout, 8), lambda i: (0, 0, 0)),    # weights (grid-invariant)
        ],
        out_specs=pl.BlockSpec((cout, m_tile), lambda i: (0, i)),  # lane-dense [Cout, M_tile]
        compiler_params=pltpu.CompilerParams(
            dimension_semantics=("parallel",)),                    # 2-TC sharding on v7x
        cost_estimate=pl.CostEstimate(
            flops=3 * Mp * cout * K8,
            transcendentals=0,
            bytes_accessed=4 * (K8 * Mp + n_k8 * cout * 8 + cout * Mp)),
    )(xT, w_ch)
    return out[:, :M], Ho, Wo


# ================= Kernel B: squeeze-excite + channel scale + residual =================
def _se_scale_residual_kernel(out_ref, sc_ref, fc1w_ref, fc1b_ref, fc2w_ref, fc2b_ref, o_ref):
    o = out_ref[0]                                               # [C, HW]
    pooled = jnp.mean(o, axis=1, keepdims=True)                  # [C, 1]  global avg pool
    h = jnp.dot(fc1w_ref[...], pooled,
                preferred_element_type=jnp.float32) + fc1b_ref[...]       # MXU, [C//16, 1]
    h = jnp.maximum(h, 0.0)
    s = jnp.dot(fc2w_ref[...], h,
                preferred_element_type=jnp.float32) + fc2b_ref[...]       # MXU, [C, 1]
    s = jax.nn.sigmoid(s)
    o_ref[0] = o * s + sc_ref[0]                                 # pre-act block: no final ReLU


def se_scale_residual_pallas(out3, sc3, fc1wT, fc1b, fc2wT, fc2b):
    N, C, HW = out3.shape
    c16 = fc1wT.shape[0]
    return pl.pallas_call(
        _se_scale_residual_kernel,
        out_shape=jax.ShapeDtypeStruct((N, C, HW), jnp.float32),
        grid=(N,),
        in_specs=[
            pl.BlockSpec((1, C, HW), lambda n: (n, 0, 0)),
            pl.BlockSpec((1, C, HW), lambda n: (n, 0, 0)),
            pl.BlockSpec((c16, C), lambda n: (0, 0)),
            pl.BlockSpec((c16, 1), lambda n: (0, 0)),
            pl.BlockSpec((C, c16), lambda n: (0, 0)),
            pl.BlockSpec((C, 1), lambda n: (0, 0)),
        ],
        out_specs=pl.BlockSpec((1, C, HW), lambda n: (n, 0, 0)),
        compiler_params=pltpu.CompilerParams(dimension_semantics=("parallel",)),
    )(out3, sc3, fc1wT, fc1b, fc2wT, fc2b)


# ------------------------------ XLA glue: BatchNorm + ReLU ------------------------------
def _bn_relu_nchw(t, gamma, beta):
    mu = jnp.mean(t, axis=(0, 2, 3), keepdims=True)
    var = jnp.mean((t - mu) ** 2, axis=(0, 2, 3), keepdims=True)
    y = (t - mu) * jax.lax.rsqrt(var + _EPS) * gamma.reshape(1, -1, 1, 1) + beta.reshape(1, -1, 1, 1)
    return jnp.maximum(y, 0.0)


def _bn_relu_cm(t_cm, gamma, beta):
    mu = jnp.mean(t_cm, axis=1, keepdims=True)
    var = jnp.mean((t_cm - mu) ** 2, axis=1, keepdims=True)
    y = (t_cm - mu) * jax.lax.rsqrt(var + _EPS) * gamma[:, None] + beta[:, None]
    return jnp.maximum(y, 0.0)


# ------------------------------------ forward (Pallas) ------------------------------------
def preact_block_pallas(x, p, stride):
    x = x.astype(jnp.float32)
    N, Cin, H, W = x.shape
    planes = p["w1"].shape[0]

    a1 = _bn_relu_nchw(x, p["bn1_g"], p["bn1_b"])                         # relu(bn1(x))

    out1_cm, Ho, Wo = adder_conv_pallas(a1, p["w1"], stride, 1)           # conv1 -> [planes, M]

    a2_cm = _bn_relu_cm(out1_cm, p["bn2_g"], p["bn2_b"])                  # relu(bn2(.))
    a2 = a2_cm.reshape(planes, N, Ho, Wo).transpose(1, 0, 2, 3)

    out2_cm, _, _ = adder_conv_pallas(a2, p["w2"], 1, 1)                  # conv2 -> [planes, M]

    if stride != 1 or Cin != planes:                                      # shortcut(relu(bn1(x)))
        sc_cm, _, _ = adder_conv_pallas(a1, p["ws"], stride, 0)
        sc3 = sc_cm.reshape(planes, N, Ho * Wo).transpose(1, 0, 2)
    else:                                                                 # identity shortcut = x
        sc3 = x.reshape(N, Cin, H * W)

    out3 = out2_cm.reshape(planes, N, Ho * Wo).transpose(1, 0, 2)         # [N, C, HW]

    y = se_scale_residual_pallas(
        out3, sc3,
        p["fc1_w"].T, p["fc1_b"][:, None],                                # [C//16, C], [C//16, 1]
        p["fc2_w"].T, p["fc2_b"][:, None])                                # [C, C//16], [C, 1]
    return y.reshape(N, planes, Ho, Wo)


# --------------------------------- pure-JAX reference ---------------------------------
def _adder2d_ref(x, w, stride, padding):
    N, Cin, H, W = x.shape
    Cout, _, kh, kw = w.shape
    Ho = (H + 2 * padding - kh) // stride + 1
    Wo = (W + 2 * padding - kw) // stride + 1
    xp = jnp.pad(x, ((0, 0), (0, 0), (padding, padding), (padding, padding)))
    cols = []
    for i in range(kh):
        for j in range(kw):
            cols.append(xp[:, :, i:i + (Ho - 1) * stride + 1:stride,
                              j:j + (Wo - 1) * stride + 1:stride])
    pat = jnp.stack(cols, axis=2)                                         # [N, Cin, k*k, Ho, Wo]
    wf = w.reshape(Cout, Cin, kh * kw)
    diff = jnp.abs(pat[:, None] - wf[None, :, :, :, None, None])
    return -jnp.sum(diff, axis=(2, 3))                                    # [N, Cout, Ho, Wo]


def preact_block_ref(x, p, stride):
    x = x.astype(jnp.float32)
    N, Cin, H, W = x.shape
    planes = p["w1"].shape[0]

    def bn(t, g, b):
        mu = jnp.mean(t, axis=(0, 2, 3), keepdims=True)
        var = jnp.mean((t - mu) ** 2, axis=(0, 2, 3), keepdims=True)
        return (t - mu) * jax.lax.rsqrt(var + _EPS) * g.reshape(1, -1, 1, 1) + b.reshape(1, -1, 1, 1)

    a1 = jnp.maximum(bn(x, p["bn1_g"], p["bn1_b"]), 0.0)
    shortcut = _adder2d_ref(a1, p["ws"], stride, 0) if (stride != 1 or Cin != planes) else x
    out = _adder2d_ref(a1, p["w1"], stride, 1)
    out = _adder2d_ref(jnp.maximum(bn(out, p["bn2_g"], p["bn2_b"]), 0.0), p["w2"], 1, 1)
    pooled = jnp.mean(out, axis=(2, 3))                                   # [N, planes]
    # SE fc layers as explicit f32 multiply+sum (keeps the reference exact)
    h = jnp.maximum(jnp.sum(pooled[:, :, None] * p["fc1_w"][None], axis=1) + p["fc1_b"], 0.0)
    s = jax.nn.sigmoid(jnp.sum(h[:, :, None] * p["fc2_w"][None], axis=1) + p["fc2_b"])
    return out * s[:, :, None, None] + shortcut


# ------------------------------------------ main ------------------------------------------
if __name__ == "__main__":
    N, in_planes, planes, H, W, stride = 2, 16, 32, 8, 8, 1   # planes//16 = 2; shortcut path active
    c16 = planes // 16

    ks = jax.random.split(jax.random.PRNGKey(0), 12)
    p = {
        "w1": 0.1 * jax.random.normal(ks[0], (planes, in_planes, 3, 3), jnp.float32),
        "w2": 0.1 * jax.random.normal(ks[1], (planes, planes, 3, 3), jnp.float32),
        "ws": 0.1 * jax.random.normal(ks[2], (planes, in_planes, 1, 1), jnp.float32),
        "bn1_g": 1.0 + 0.1 * jax.random.normal(ks[3], (in_planes,), jnp.float32),
        "bn1_b": 0.1 * jax.random.normal(ks[4], (in_planes,), jnp.float32),
        "bn2_g": 1.0 + 0.1 * jax.random.normal(ks[5], (planes,), jnp.float32),
        "bn2_b": 0.1 * jax.random.normal(ks[6], (planes,), jnp.float32),
        "fc1_w": 0.1 * jax.random.normal(ks[7], (planes, c16), jnp.float32),
        "fc1_b": 0.1 * jax.random.normal(ks[8], (c16,), jnp.float32),
        "fc2_w": 0.1 * jax.random.normal(ks[9], (c16, planes), jnp.float32),
        "fc2_b": 0.1 * jax.random.normal(ks[10], (planes,), jnp.float32),
    }
    x = jax.random.normal(ks[11], (N, in_planes, H, W), jnp.float32)

    out = jax.block_until_ready(preact_block_pallas(x, p, stride))
    ref = jax.block_until_ready(preact_block_ref(x, p, stride))

    assert out.shape == (N, planes, H, W), out.shape
    err = float(jnp.max(jnp.abs(out - ref)))
    assert bool(jnp.allclose(out, ref, rtol=2e-3, atol=2e-3)), f"mismatch vs reference, max abs err {err}"
    print("KERNEL_OK")
</pallas_src>

<mosaic_0001>
module attributes {stable_mosaic.version = 11 : i64} {
  func.func @_adder_conv_kernel(%arg0: i32, %arg1: memref<144x128xf32, #tpu.memory_space<vmem>>, %arg2: memref<18x32x8xf32, #tpu.memory_space<vmem>>, %arg3: memref<32x128xf32, #tpu.memory_space<vmem>>) attributes {dimension_semantics = [#tpu.dimension_semantics<parallel>], iteration_bounds = array<i64: 1>, scalar_prefetch = 0 : i64, scratch_operands = 0 : i64, tpu.core_type = #tpu.core_type<tc>, window_params = [{transform_indices = @transform_0, window_bounds = array<i64: 144, 128>}, {pipeline_mode = #tpu.pipeline_mode<synchronous>, transform_indices = @transform_1, window_bounds = array<i64: 18, 32, 8>}, {transform_indices = @transform_2, window_bounds = array<i64: 32, 128>}]} {
    %cst = arith.constant 0.000000e+00 : f32
    %0 = vector.broadcast %cst : f32 to vector<32x128xf32>
    %c0_i32 = arith.constant 0 : i32
    %c18_i32 = arith.constant 18 : i32
    %1 = arith.addi %c0_i32, %c18_i32 : i32
    %c1_i32 = arith.constant 1 : i32
    %2 = scf.for %arg4 = %c0_i32 to %1 step %c1_i32 iter_args(%arg5 = %0) -> (vector<32x128xf32>)  : i32 {
      %c8_i32 = arith.constant 8 : i32
      %6 = arith.muli %arg4, %c8_i32 : i32
      %7 = tpu.assume_multiple %6, 8 : i32
      %8 = arith.index_cast %7 : i32 to index
      %c0_3 = arith.constant 0 : index
      %9 = vector.load %arg1[%8, %c0_3] : memref<144x128xf32, #tpu.memory_space<vmem>>, vector<8x128xf32>
      %10 = arith.index_cast %arg4 : i32 to index
      %c0_4 = arith.constant 0 : index
      %c0_5 = arith.constant 0 : index
      %11 = vector.load %arg2[%10, %c0_4, %c0_5] : memref<18x32x8xf32, #tpu.memory_space<vmem>>, vector<1x32x8xf32>
      %12 = vector.shape_cast %11 : vector<1x32x8xf32> to vector<32x8xf32>
      %13 = vector.extract_strided_slice %9 {offsets = [0, 0], sizes = [1, 128], strides = [1, 1]} : vector<8x128xf32> to vector<1x128xf32>
      %14 = vector.extract_strided_slice %12 {offsets = [0, 0], sizes = [32, 1], strides = [1, 1]} : vector<32x8xf32> to vector<32x1xf32>
      %15 = vector.broadcast %13 : vector<1x128xf32> to vector<32x128xf32>
      %16 = vector.broadcast %14 : vector<32x1xf32> to vector<32x128xf32>
      %17 = arith.subf %15, %16 : vector<32x128xf32>
      %18 = math.absf %17 : vector<32x128xf32>
      %19 = arith.addf %arg5, %18 : vector<32x128xf32>
      %20 = vector.extract_strided_slice %9 {offsets = [1, 0], sizes = [1, 128], strides = [1, 1]} : vector<8x128xf32> to vector<1x128xf32>
      %21 = vector.extract_strided_slice %12 {offsets = [0, 1], sizes = [32, 1], strides = [1, 1]} : vector<32x8xf32> to vector<32x1xf32>
      %22 = vector.broadcast %20 : vector<1x128xf32> to vector<32x128xf32>
      %23 = vector.broadcast %21 : vector<32x1xf32> to vector<32x128xf32>
      %24 = arith.subf %22, %23 : vector<32x128xf32>
      %25 = math.absf %24 : vector<32x128xf32>
      %26 = arith.addf %19, %25 : vector<32x128xf32>
      %27 = vector.extract_strided_slice %9 {offsets = [2, 0], sizes = [1, 128], strides = [1, 1]} : vector<8x128xf32> to vector<1x128xf32>
      %28 = vector.extract_strided_slice %12 {offsets = [0, 2], sizes = [32, 1], strides = [1, 1]} : vector<32x8xf32> to vector<32x1xf32>
      %29 = vector.broadcast %27 : vector<1x128xf32> to vector<32x128xf32>
      %30 = vector.broadcast %28 : vector<32x1xf32> to vector<32x128xf32>
      %31 = arith.subf %29, %30 : vector<32x128xf32>
      %32 = math.absf %31 : vector<32x128xf32>
      %33 = arith.addf %26, %32 : vector<32x128xf32>
      %34 = vector.extract_strided_slice %9 {offsets = [3, 0], sizes = [1, 128], strides = [1, 1]} : vector<8x128xf32> to vector<1x128xf32>
      %35 = vector.extract_strided_slice %12 {offsets = [0, 3], sizes = [32, 1], strides = [1, 1]} : vector<32x8xf32> to vector<32x1xf32>
      %36 = vector.broadcast %34 : vector<1x128xf32> to vector<32x128xf32>
      %37 = vector.broadcast %35 : vector<32x1xf32> to vector<32x128xf32>
      %38 = arith.subf %36, %37 : vector<32x128xf32>
      %39 = math.absf %38 : vector<32x128xf32>
      %40 = arith.addf %33, %39 : vector<32x128xf32>
      %41 = vector.extract_strided_slice %9 {offsets = [4, 0], sizes = [1, 128], strides = [1, 1]} : vector<8x128xf32> to vector<1x128xf32>
      %42 = vector.extract_strided_slice %12 {offsets = [0, 4], sizes = [32, 1], strides = [1, 1]} : vector<32x8xf32> to vector<32x1xf32>
      %43 = vector.broadcast %41 : vector<1x128xf32> to vector<32x128xf32>
      %44 = vector.broadcast %42 : vector<32x1xf32> to vector<32x128xf32>
      %45 = arith.subf %43, %44 : vector<32x128xf32>
      %46 = math.absf %45 : vector<32x128xf32>
      %47 = arith.addf %40, %46 : vector<32x128xf32>
      %48 = vector.extract_strided_slice %9 {offsets = [5, 0], sizes = [1, 128], strides = [1, 1]} : vector<8x128xf32> to vector<1x128xf32>
      %49 = vector.extract_strided_slice %12 {offsets = [0, 5], sizes = [32, 1], strides = [1, 1]} : vector<32x8xf32> to vector<32x1xf32>
      %50 = vector.broadcast %48 : vector<1x128xf32> to vector<32x128xf32>
      %51 = vector.broadcast %49 : vector<32x1xf32> to vector<32x128xf32>
      %52 = arith.subf %50, %51 : vector<32x128xf32>
      %53 = math.absf %52 : vector<32x128xf32>
      %54 = arith.addf %47, %53 : vector<32x128xf32>
      %55 = vector.extract_strided_slice %9 {offsets = [6, 0], sizes = [1, 128], strides = [1, 1]} : vector<8x128xf32> to vector<1x128xf32>
      %56 = vector.extract_strided_slice %12 {offsets = [0, 6], sizes = [32, 1], strides = [1, 1]} : vector<32x8xf32> to vector<32x1xf32>
      %57 = vector.broadcast %55 : vector<1x128xf32> to vector<32x128xf32>
      %58 = vector.broadcast %56 : vector<32x1xf32> to vector<32x128xf32>
      %59 = arith.subf %57, %58 : vector<32x128xf32>
      %60 = math.absf %59 : vector<32x128xf32>
      %61 = arith.addf %54, %60 : vector<32x128xf32>
      %62 = vector.extract_strided_slice %9 {offsets = [7, 0], sizes = [1, 128], strides = [1, 1]} : vector<8x128xf32> to vector<1x128xf32>
      %63 = vector.extract_strided_slice %12 {offsets = [0, 7], sizes = [32, 1], strides = [1, 1]} : vector<32x8xf32> to vector<32x1xf32>
      %64 = vector.broadcast %62 : vector<1x128xf32> to vector<32x128xf32>
      %65 = vector.broadcast %63 : vector<32x1xf32> to vector<32x128xf32>
      %66 = arith.subf %64, %65 : vector<32x128xf32>
      %67 = math.absf %66 : vector<32x128xf32>
      %68 = arith.addf %61, %67 : vector<32x128xf32>
      scf.yield %68 : vector<32x128xf32>
    }
    %c18_i32_0 = arith.constant 18 : i32
    %cst_1 = arith.constant 0.000000e+00 : f32
    %3 = vector.broadcast %cst_1 : f32 to vector<32x128xf32>
    %4 = arith.subf %3, %2 : vector<32x128xf32>
    %c0 = arith.constant 0 : index
    %c0_2 = arith.constant 0 : index
    %5 = vector.load %arg3[%c0, %c0_2] : memref<32x128xf32, #tpu.memory_space<vmem>>, vector<32x128xf32>
    tpu.vector_store %arg3[%c0, %c0_2], %4 {strides = array<i32>} : memref<32x128xf32, #tpu.memory_space<vmem>>, vector<32x128xf32>,
    return
  }
  func.func @transform_0(%arg0: i32) -> (i32, i32) {
    %c0_i32 = arith.constant 0 : i32
    %c0_i32_0 = arith.constant 0 : i32
    return %c0_i32, %arg0 : i32, i32
  }
  func.func @transform_1(%arg0: i32) -> (i32, i32, i32) {
    %c0_i32 = arith.constant 0 : i32
    %c0_i32_0 = arith.constant 0 : i32
    %c0_i32_1 = arith.constant 0 : i32
    %c0_i32_2 = arith.constant 0 : i32
    return %c0_i32, %c0_i32_0, %c0_i32_1 : i32, i32, i32
  }
  func.func @transform_2(%arg0: i32) -> (i32, i32) {
    %c0_i32 = arith.constant 0 : i32
    %c0_i32_0 = arith.constant 0 : i32
    return %c0_i32, %arg0 : i32, i32
  }
}

</mosaic_0001>

<llo_original>
// kernel: tpu_custom_call.1
$region0: #{tpu_custom_call.1}
  #allocation0 [shape = 'u32[]', space=smem, size = 0x4, offset = 0x4, fixed_abs, tag = 'smem constant byte address 0x4 - core index']
  #allocation1 [shape = 'u32[144,128]{1,0:T(1,128)}', space=vmem, size = 0x12000, scoped, tag = 'internal scratch']
  %s0 = inlined_call_operand.vmem [shape: f32[144,128], index: 0, kind: input, shape index: {}]
  %s1 = inlined_call_operand.vmem [shape: f32[18,32,8], index: 1, kind: input, shape index: {}]
  %s2 = inlined_call_operand.hbm [shape: f32[32,128], index: 2, kind: output, shape index: {}]
  %s3 = sld [smem:[#allocation0]]
  $region25: #{tpu_custom_call.1} parent=0
    _
  %s5 = ssub.s32 1, %s3
  %s6 = scalar_select 0, %s5, %s3
  $region1: #{tpu_custom_call.1} parent=0
    #allocation2 [shape = 'u8[16384]{0}', space=vmem, size = 0x4000, scoped, tag = 'output window, operand 0, single buffered']
    #allocation3 [shape = 's32[1]{0}', space=sflag, size = 0x4, scoped, tag = 'scoped memory for tpu_custom_call.1']
    %7 = vsyncpa [#allocation3], 0
    // Predicated region
    $region2: #{tpu_custom_call.1} parent=1 // pred_check
      _
    $region3: #{tpu_custom_call.1} parent=1 // pred_check_branch
      %9 = sbr.rel (0) target = $region5
    $region4: #{tpu_custom_call.1} parent=1 // pred_region
      _
    $region5: #{tpu_custom_call.1} parent=1 // pred_fallthru
      _
    // Predicated region
    $region6: #{tpu_custom_call.1} parent=1 // pred_check
      _
    $region7: #{tpu_custom_call.1} parent=1 // pred_check_branch
      %11 = sbr.rel (0) target = $region9
    $region8: #{tpu_custom_call.1} parent=1 // pred_region
      _
    $region9: #{tpu_custom_call.1} parent=1 // pred_fallthru
      _
    loop: start=0, step=1, limit=18
    $region10: #{tpu_custom_call.1} parent=1 // loop_pre_header
      _
    $region11: #{tpu_custom_call.1} parent=1 // loop_header
      %s13 = sphi 0, %s17
      %p14 = scmp.ge.s32.totalorder %s13, 18
      %v18 = vphi 0.0, %v287
      %v19 = vphi 0.0, %v288
      %v20 = vphi 0.0, %v289
      %v21 = vphi 0.0, %v290
    $region12: #{tpu_custom_call.1} parent=1 // loop_header_branch
      %16 = sbr.rel (%p14) target = $region16
    $region13: #{tpu_custom_call.1} parent=1 // loop_body
      %s22 = smul.u32 %s13, 8
      %s23 = scalar_lea.vmem %s0, %s22
      %v24 = vld [vmem:[%s23] sm:$0xff]
      %s25 = smul.u32 %s13, 32
      %s26 = scalar_lea.vmem %s1, %s25
      %v27 = vld [vmem:[%s26] sm:$0xff]
      %v28 = vld [vmem:[%s26 + $0x8] sm:$0xff]
      %v29 = vld [vmem:[%s26 + $0x10] sm:$0xff]
      %v30 = vld [vmem:[%s26 + $0x18] sm:$0xff]
      %v31 = vlaneseq
      %v32 = vshrl.u32 %v31, 7
      %v33 = vsub.s32 0, %v32
      %v34 = vrot.slane %v24, %v33
      %36 = vset.pattern.permute.xlu0 0
      %37 = vperm.xlu0 %36, %v27
      %v38 = vpop.permute.xlu0 %37
      %41 = vset.pattern.permute.xlu0 0
      %42 = vperm.xlu0 %41, %v28
      %v43 = vpop.permute.xlu0 %42
      %46 = vset.pattern.permute.xlu0 0
      %47 = vperm.xlu0 %46, %v29
      %v48 = vpop.permute.xlu0 %47
      %51 = vset.pattern.permute.xlu0 0
      %52 = vperm.xlu0 %51, %v30
      %v53 = vpop.permute.xlu0 %52
      %v55 = vsub.f32 %v34, %v38
      %v56 = vsub.f32 %v34, %v43
      %v57 = vsub.f32 %v34, %v48
      %v58 = vsub.f32 %v34, %v53
      %v59 = vand.u32 2147483647, %v55
      %v60 = vand.u32 2147483647, %v56
      %v61 = vand.u32 2147483647, %v57
      %v62 = vand.u32 2147483647, %v58
      %v63 = vadd.f32 %v18, %v59
      %v64 = vadd.f32 %v19, %v60
      %v65 = vadd.f32 %v20, %v61
      %v66 = vadd.f32 %v21, %v62
      %v67 = vlaneseq
      %v68 = vshrl.u32 %v67, 7
      %v69 = vsub.s32 1, %v68
      %v70 = vrot.slane %v24, %v69
      %71 = vset.pattern.permute.xlu0 1
      %72 = vperm.xlu0 %71, %v27
      %v73 = vpop.permute.xlu0 %72
      %75 = vset.pattern.permute.xlu0 1
      %76 = vperm.xlu0 %75, %v28
      %v77 = vpop.permute.xlu0 %76
      %79 = vset.pattern.permute.xlu0 1
      %80 = vperm.xlu0 %79, %v29
      %v81 = vpop.permute.xlu0 %80
      %83 = vset.pattern.permute.xlu0 1
      %84 = vperm.xlu0 %83, %v30
      %v85 = vpop.permute.xlu0 %84
      %v87 = vsub.f32 %v70, %v73
      %v88 = vsub.f32 %v70, %v77
      %v89 = vsub.f32 %v70, %v81
      %v90 = vsub.f32 %v70, %v85
      %v91 = vand.u32 2147483647, %v87
      %v92 = vand.u32 2147483647, %v88
      %v93 = vand.u32 2147483647, %v89
      %v94 = vand.u32 2147483647, %v90
      %v95 = vadd.f32 %v63, %v91
      %v96 = vadd.f32 %v64, %v92
      %v97 = vadd.f32 %v65, %v93
      %v98 = vadd.f32 %v66, %v94
      %v99 = vlaneseq
      %v100 = vshrl.u32 %v99, 7
      %v101 = vsub.s32 2, %v100
      %v102 = vrot.slane %v24, %v101
      %103 = vset.pattern.permute.xlu0 2
      %104 = vperm.xlu0 %103, %v27
      %v105 = vpop.permute.xlu0 %104
      %107 = vset.pattern.permute.xlu0 2
      %108 = vperm.xlu0 %107, %v28
      %v109 = vpop.permute.xlu0 %108
      %111 = vset.pattern.permute.xlu0 2
      %112 = vperm.xlu0 %111, %v29
      %v113 = vpop.permute.xlu0 %112
      %115 = vset.pattern.permute.xlu0 2
      %116 = vperm.xlu0 %115, %v30
      %v117 = vpop.permute.xlu0 %116
      %v119 = vsub.f32 %v102, %v105
      %v120 = vsub.f32 %v102, %v109
      %v121 = vsub.f32 %v102, %v113
      %v122 = vsub.f32 %v102, %v117
      %v123 = vand.u32 2147483647, %v119
      %v124 = vand.u32 2147483647, %v120
      %v125 = vand.u32 2147483647, %v121
      %v126 = vand.u32 2147483647, %v122
      %v127 = vadd.f32 %v95, %v123
      %v128 = vadd.f32 %v96, %v124
      %v129 = vadd.f32 %v97, %v125
      %v130 = vadd.f32 %v98, %v126
      %v131 = vlaneseq
      %v132 = vshrl.u32 %v131, 7
      %v133 = vsub.s32 3, %v132
      %v134 = vrot.slane %v24, %v133
      %135 = vset.pattern.permute.xlu0 3
      %136 = vperm.xlu0 %135, %v27
      %v137 = vpop.permute.xlu0 %136
      %139 = vset.pattern.permute.xlu0 3
      %140 = vperm.xlu0 %139, %v28
      %v141 = vpop.permute.xlu0 %140
      %143 = vset.pattern.permute.xlu0 3
      %144 = vperm.xlu0 %143, %v29
      %v145 = vpop.permute.xlu0 %144
      %147 = vset.pattern.permute.xlu0 3
      %148 = vperm.xlu0 %147, %v30
      %v149 = vpop.permute.xlu0 %148
      %v151 = vsub.f32 %v134, %v137
      %v152 = vsub.f32 %v134, %v141
      %v153 = vsub.f32 %v134, %v145
      %v154 = vsub.f32 %v134, %v149
      %v155 = vand.u32 2147483647, %v151
      %v156 = vand.u32 2147483647, %v152
      %v157 = vand.u32 2147483647, %v153
      %v158 = vand.u32 2147483647, %v154
      %v159 = vadd.f32 %v127, %v155
      %v160 = vadd.f32 %v128, %v156
      %v161 = vadd.f32 %v129, %v157
      %v162 = vadd.f32 %v130, %v158
      %v163 = vlaneseq
      %v164 = vshrl.u32 %v163, 7
      %v165 = vsub.s32 4, %v164
      %v166 = vrot.slane %v24, %v165
      %167 = vset.pattern.permute.xlu0 4
      %168 = vperm.xlu0 %167, %v27
      %v169 = vpop.permute.xlu0 %168
      %171 = vset.pattern.permute.xlu0 4
      %172 = vperm.xlu0 %171, %v28
      %v173 = vpop.permute.xlu0 %172
      %175 = vset.pattern.permute.xlu0 4
      %176 = vperm.xlu0 %175, %v29
      %v177 = vpop.permute.xlu0 %176
      %179 = vset.pattern.permute.xlu0 4
      %180 = vperm.xlu0 %179, %v30
      %v181 = vpop.permute.xlu0 %180
      %v183 = vsub.f32 %v166, %v169
      %v184 = vsub.f32 %v166, %v173
      %v185 = vsub.f32 %v166, %v177
      %v186 = vsub.f32 %v166, %v181
      %v187 = vand.u32 2147483647, %v183
      %v188 = vand.u32 2147483647, %v184
      %v189 = vand.u32 2147483647, %v185
      %v190 = vand.u32 2147483647, %v186
      %v191 = vadd.f32 %v159, %v187
      %v192 = vadd.f32 %v160, %v188
      %v193 = vadd.f32 %v161, %v189
      %v194 = vadd.f32 %v162, %v190
      %v195 = vlaneseq
      %v196 = vshrl.u32 %v195, 7
      %v197 = vsub.s32 5, %v196
      %v198 = vrot.slane %v24, %v197
      %199 = vset.pattern.permute.xlu0 5
      %200 = vperm.xlu0 %199, %v27
      %v201 = vpop.permute.xlu0 %200
      %203 = vset.pattern.permute.xlu0 5
      %204 = vperm.xlu0 %203, %v28
      %v205 = vpop.permute.xlu0 %204
      %207 = vset.pattern.permute.xlu0 5
      %208 = vperm.xlu0 %207, %v29
      %v209 = vpop.permute.xlu0 %208
      %211 = vset.pattern.permute.xlu0 5
      %212 = vperm.xlu0 %211, %v30
      %v213 = vpop.permute.xlu0 %212
      %v215 = vsub.f32 %v198, %v201
      %v216 = vsub.f32 %v198, %v205
      %v217 = vsub.f32 %v198, %v209
      %v218 = vsub.f32 %v198, %v213
      %v219 = vand.u32 2147483647, %v215
      %v220 = vand.u32 2147483647, %v216
      %v221 = vand.u32 2147483647, %v217
      %v222 = vand.u32 2147483647, %v218
      %v223 = vadd.f32 %v191, %v219
      %v224 = vadd.f32 %v192, %v220
      %v225 = vadd.f32 %v193, %v221
      %v226 = vadd.f32 %v194, %v222
      %v227 = vlaneseq
      %v228 = vshrl.u32 %v227, 7
      %v229 = vsub.s32 6, %v228
      %v230 = vrot.slane %v24, %v229
      %231 = vset.pattern.permute.xlu0 6
      %232 = vperm.xlu0 %231, %v27
      %v233 = vpop.permute.xlu0 %232
      %235 = vset.pattern.permute.xlu0 6
      %236 = vperm.xlu0 %235, %v28
      %v237 = vpop.permute.xlu0 %236
      %239 = vset.pattern.permute.xlu0 6
      %240 = vperm.xlu0 %239, %v29
      %v241 = vpop.permute.xlu0 %240
      %243 = vset.pattern.permute.xlu0 6
      %244 = vperm.xlu0 %243, %v30
      %v245 = vpop.permute.xlu0 %244
      %v247 = vsub.f32 %v230, %v233
      %v248 = vsub.f32 %v230, %v237
      %v249 = vsub.f32 %v230, %v241
      %v250 = vsub.f32 %v230, %v245
      %v251 = vand.u32 2147483647, %v247
      %v252 = vand.u32 2147483647, %v248
      %v253 = vand.u32 2147483647, %v249
      %v254 = vand.u32 2147483647, %v250
      %v255 = vadd.f32 %v223, %v251
      %v256 = vadd.f32 %v224, %v252
      %v257 = vadd.f32 %v225, %v253
      %v258 = vadd.f32 %v226, %v254
      %v259 = vlaneseq
      %v260 = vshrl.u32 %v259, 7
      %v261 = vsub.s32 7, %v260
      %v262 = vrot.slane %v24, %v261
      %263 = vset.pattern.permute.xlu0 7
      %264 = vperm.xlu0 %263, %v27
      %v265 = vpop.permute.xlu0 %264
      %267 = vset.pattern.permute.xlu0 7
      %268 = vperm.xlu0 %267, %v28
      %v269 = vpop.permute.xlu0 %268
      %271 = vset.pattern.permute.xlu0 7
      %272 = vperm.xlu0 %271, %v29
      %v273 = vpop.permute.xlu0 %272
      %275 = vset.pattern.permute.xlu0 7
      %276 = vperm.xlu0 %275, %v30
      %v277 = vpop.permute.xlu0 %276
      %v279 = vsub.f32 %v262, %v265
      %v280 = vsub.f32 %v262, %v269
      %v281 = vsub.f32 %v262, %v273
      %v282 = vsub.f32 %v262, %v277
      %v283 = vand.u32 2147483647, %v279
      %v284 = vand.u32 2147483647, %v280
      %v285 = vand.u32 2147483647, %v281
      %v286 = vand.u32 2147483647, %v282
      %v287 = vadd.f32 %v255, %v283
      %v288 = vadd.f32 %v256, %v284
      %v289 = vadd.f32 %v257, %v285
      %v290 = vadd.f32 %v258, %v286
    $region14: #{tpu_custom_call.1} parent=1 // loop_footer
      %s17 = sadd.s32 1, %s13
    $region15: #{tpu_custom_call.1} parent=1 // loop_footer_branch
      %12 = sbr.rel target = $region11
    $region16: #{tpu_custom_call.1} parent=1 // loop_exit
      _
    %v291 = vsub.f32 0.0, %v18
    %v292 = vsub.f32 0.0, %v19
    %v293 = vsub.f32 0.0, %v20
    %v294 = vsub.f32 0.0, %v21
    %295 = vst [vmem:[#allocation2] sm:$0xff] %v291
    %296 = vst [vmem:[#allocation2 + $0x8] sm:$0xff] %v292
    %297 = vst [vmem:[#allocation2 + $0x10] sm:$0xff] %v293
    %298 = vst [vmem:[#allocation2 + $0x18] sm:$0xff] %v294
    // Predicated region
    $region17: #{tpu_custom_call.1} parent=1 // pred_check
      _
    $region18: #{tpu_custom_call.1} parent=1 // pred_check_branch
      %300 = sbr.rel (0) target = $region20
    $region19: #{tpu_custom_call.1} parent=1 // pred_region
      %s302 = ssub.s32 512, 512
      %303 = vsyncadd [#allocation3], %s302
      %s304 = sshll.u32 [#allocation2], 4
      %s305 = int_to_ptr.vmem [resolvable:$true] %s304
      %310 = dma.vmem_to_hbm [thread:$0]  %s305, 512, %s2, [#allocation3], 128, 128, 8
    $region20: #{tpu_custom_call.1} parent=1 // pred_fallthru
      _
    // Predicated region
    $region21: #{tpu_custom_call.1} parent=1 // pred_check
      _
    $region22: #{tpu_custom_call.1} parent=1 // pred_check_branch
      %312 = sbr.rel (0) target = $region24
    $region23: #{tpu_custom_call.1} parent=1 // pred_region
      %313 = dma.done [#allocation3], 512
    $region24: #{tpu_custom_call.1} parent=1 // pred_fallthru
      _
    %314 = vsyncpa [#allocation3], 1

</llo_original>
